<compile_context>
chip_gen: v7x
topology: tpu7x:2x2x1
jax: 0.10.0
libtpu: 0.0.40
codegen_flags: <defaults>
</compile_context>

<pallas_src>
import jax
import jax.numpy as jnp
from jax.experimental import pallas as pl
from jax.experimental.pallas import tpu as pltpu


def sublayer_connection_kernel(xfull_ref, xres_ref, gamma_ref, beta_ref,
                               w_ref, bias_ref, out_ref, normed_ref):
    j = pl.program_id(1)

    # --- LayerNorm once per row tile (column tiles all reuse the scratch) ---
    @pl.when(j == 0)
    def _():
        x = xfull_ref[...].astype(jnp.float32)              # (TM, D)
        d = x.shape[-1]
        # Fused single-pass stats: sum and sum-of-squares.
        s1 = jnp.sum(x, axis=-1, keepdims=True)              # (TM, 1)
        s2 = jnp.sum(x * x, axis=-1, keepdims=True)          # (TM, 1)
        mean = s1 * (1.0 / d)
        # torch.std is unbiased: var = (sum(x^2) - D*mean^2) / (D - 1)
        var = (s2 - mean * s1) * (1.0 / (d - 1))
        std = jnp.sqrt(jnp.maximum(var, 0.0))
        inv = pl.reciprocal(std + 1e-6, approx=False)         # EUP, exact
        gamma = gamma_ref[...].astype(jnp.float32)            # (1, D)
        beta = beta_ref[...].astype(jnp.float32)              # (1, D)
        normed = gamma * (x - mean) * inv + beta
        normed_ref[...] = normed.astype(normed_ref.dtype)     # bf16 for the MXU

    # --- sublayer: Linear(D, D), this step computes output columns [jTN, (j+1)TN)
    y = jnp.dot(normed_ref[...], w_ref[...],                  # (TM,D)x(D,TN)
                preferred_element_type=jnp.float32)

    # --- dropout (eval = identity) + residual, f32 math, cast on store ---
    out_ref[...] = (xres_ref[...].astype(jnp.float32) + y
                    + bias_ref[...].astype(jnp.float32)).astype(out_ref.dtype)


def _round_up(x, m):
    return ((x + m - 1) // m) * m


def _pick_tile(dim, target, align):
    """Largest multiple of `align` that divides `dim` and is <= target; else dim."""
    if dim % align == 0:
        t = max(align, (min(target, dim) // align) * align)
        while dim % t:
            t -= align
        return t
    return dim


def sublayer_connection(x, gamma, beta, w, bias, *,
                        tm=256, tn_target=512, matmul_dtype=jnp.bfloat16):
    """x: (N, D). gamma/beta/bias: (D,). w: (D, D). Returns (N, D) in x.dtype."""
    N, D = x.shape
    assert w.shape == (D, D)

    # --- tile selection ---
    tm = _round_up(min(tm, _round_up(N, 8)), 8)        # row tile, multiple of 8
    n_pad = _round_up(N, tm)
    tn = _pick_tile(D, tn_target, 128)                  # output-column tile
    grid = (n_pad // tm, D // tn)

    x_in = x if n_pad == N else jnp.pad(x, ((0, n_pad - N), (0, 0)))
    gamma2 = gamma.reshape(1, D)
    beta2 = beta.reshape(1, D)
    bias2 = bias.reshape(1, D)
    # bf16 MXU operands (f32 accumulation); also halves weight HBM traffic.
    w_mm = w if w.dtype == matmul_dtype else w.astype(matmul_dtype)

    # --- explicit VMEM budget (v7x has only 64 MiB; default scoped limit 32) ---
    isz = lambda dt: jnp.dtype(dt).itemsize
    est = (2 * tm * D * isz(x.dtype)            # x (full width), double-buffered
           + 2 * tm * tn * isz(x.dtype)         # x residual slice
           + 2 * D * tn * isz(matmul_dtype)     # weight column slab
           + 2 * tm * tn * isz(x.dtype)         # out
           + tm * D * isz(matmul_dtype)         # normed scratch
           + 8 * D * 4)                         # gamma/beta/bias
    vmem_limit = int(min(max(int(1.5 * est), 32 * 1024 * 1024), 64 * 1024 * 1024))

    return pl.pallas_call(
        sublayer_connection_kernel,
        out_shape=jax.ShapeDtypeStruct((n_pad, D), x.dtype),
        grid_spec=pltpu.PrefetchScalarGridSpec(
            num_scalar_prefetch=0,
            grid=grid,
            in_specs=[
                pl.BlockSpec((tm, D), lambda i, j: (i, 0)),   # x, full row (LN)
                pl.BlockSpec((tm, tn), lambda i, j: (i, j)),  # x, residual slice
                pl.BlockSpec((1, D), lambda i, j: (0, 0)),    # gamma (resident)
                pl.BlockSpec((1, D), lambda i, j: (0, 0)),    # beta  (resident)
                pl.BlockSpec((D, tn), lambda i, j: (0, j)),   # weight column slab
                pl.BlockSpec((1, tn), lambda i, j: (0, j)),   # bias slice
            ],
            out_specs=pl.BlockSpec((tm, tn), lambda i, j: (i, j)),
            scratch_shapes=[
                pltpu.VMEM((tm, D), matmul_dtype),            # normed rows
            ],
        ),
        compiler_params=pltpu.CompilerParams(
            dimension_semantics=("parallel", "arbitrary"),
            vmem_limit_bytes=vmem_limit,
        ),
        # NOTE: could pass input_output_aliases={0: 0} if the caller donates x
        # (residual-in-place) — left off so x stays usable for the check below.
    )(x_in, x_in, gamma2, beta2, w_mm, bias2)[:N]


if __name__ == "__main__":
    # Small transformer-like shapes: batch=2, seq=8, hidden(size)=256
    # (256 keeps the feature axis lane-dense and exercises a 2x2 tile grid).
    B, S, D = 2, 8, 256
    key = jax.random.PRNGKey(0)
    kx, kw, kb = jax.random.split(key, 3)

    x = jax.random.normal(kx, (B, S, D), dtype=jnp.float32)

    # Deterministic parameters (shapes from the module's __init__):
    gamma = jnp.ones((D,), dtype=jnp.float32)     # LayerNorm a_2
    beta = jnp.zeros((D,), dtype=jnp.float32)     # LayerNorm b_2
    w = jax.random.normal(kw, (D, D), dtype=jnp.float32) * 0.02   # sublayer Linear weight
    bias = jax.random.normal(kb, (D,), dtype=jnp.float32) * 0.02  # sublayer Linear bias

    x2d = x.reshape(B * S, D)
    # Small tiles here so the demo actually runs a multi-tile pipelined grid.
    out = sublayer_connection(x2d, gamma, beta, w, bias, tm=8, tn_target=128)
    out = out.reshape(B, S, D)
    jax.block_until_ready(out)

    # Pure-JAX f32 reference (kernel uses bf16 MXU operands -> relaxed tol).
    mean = jnp.mean(x, axis=-1, keepdims=True)
    centered = x - mean
    std = jnp.sqrt(jnp.sum(centered ** 2, axis=-1, keepdims=True) / (D - 1))
    normed = gamma * centered / (std + 1e-6) + beta
    ref = x + (jnp.einsum("bsd,de->bse", normed, w) + bias)
    assert jnp.allclose(out, ref, atol=5e-2, rtol=5e-2), "mismatch vs reference"

    print("KERNEL_OK")
</pallas_src>

<mosaic_0001>
module attributes {stable_mosaic.version = 11 : i64} {
  func.func @sublayer_connection_kernel(%arg0: i32, %arg1: i32, %arg2: memref<8x256xf32, #tpu.memory_space<vmem>>, %arg3: memref<8x128xf32, #tpu.memory_space<vmem>>, %arg4: memref<1x256xf32, #tpu.memory_space<vmem>>, %arg5: memref<1x256xf32, #tpu.memory_space<vmem>>, %arg6: memref<256x128xbf16, #tpu.memory_space<vmem>>, %arg7: memref<1x128xf32, #tpu.memory_space<vmem>>, %arg8: memref<8x128xf32, #tpu.memory_space<vmem>>, %arg9: memref<8x256xbf16, #tpu.memory_space<vmem>>) attributes {dimension_semantics = [#tpu.dimension_semantics<parallel>, #tpu.dimension_semantics<arbitrary>], iteration_bounds = array<i64: 2, 2>, scalar_prefetch = 0 : i64, scratch_operands = 1 : i64, tpu.core_type = #tpu.core_type<tc>, window_params = [{transform_indices = @transform_0, window_bounds = array<i64: 8, 256>}, {transform_indices = @transform_1, window_bounds = array<i64: 8, 128>}, {pipeline_mode = #tpu.pipeline_mode<synchronous>, transform_indices = @transform_2, window_bounds = array<i64: 1, 256>}, {pipeline_mode = #tpu.pipeline_mode<synchronous>, transform_indices = @transform_3, window_bounds = array<i64: 1, 256>}, {transform_indices = @transform_4, window_bounds = array<i64: 256, 128>}, {transform_indices = @transform_5, window_bounds = array<i64: 1, 128>}, {transform_indices = @transform_6, window_bounds = array<i64: 8, 128>}]} {
    %c0_i32 = arith.constant 0 : i32
    %0 = arith.cmpi eq, %arg1, %c0_i32 : i32
    %1 = arith.extui %0 : i1 to i32
    %c0_i32_0 = arith.constant 0 : i32
    %2 = arith.cmpi ne, %1, %c0_i32_0 : i32
    scf.if %2 {
      %c0_10 = arith.constant 0 : index
      %c0_11 = arith.constant 0 : index
      %12 = vector.load %arg2[%c0_10, %c0_11] : memref<8x256xf32, #tpu.memory_space<vmem>>, vector<8x256xf32>
      %cst_12 = arith.constant dense<0.000000e+00> : vector<8xf32>
      %13 = vector.multi_reduction <add>, %12, %cst_12 [1] : vector<8x256xf32> to vector<8xf32>
      %14 = vector.shape_cast %13 : vector<8xf32> to vector<8x1xf32>
      %15 = arith.mulf %12, %12 : vector<8x256xf32>
      %cst_13 = arith.constant dense<0.000000e+00> : vector<8xf32>
      %16 = vector.multi_reduction <add>, %15, %cst_13 [1] : vector<8x256xf32> to vector<8xf32>
      %17 = vector.shape_cast %16 : vector<8xf32> to vector<8x1xf32>
      %cst_14 = arith.constant 3.906250e-03 : f32
      %18 = vector.broadcast %cst_14 : f32 to vector<8x1xf32>
      %19 = arith.mulf %14, %18 : vector<8x1xf32>
      %20 = arith.mulf %19, %14 : vector<8x1xf32>
      %21 = arith.subf %17, %20 : vector<8x1xf32>
      %cst_15 = arith.constant 0.00392156886 : f32
      %22 = vector.broadcast %cst_15 : f32 to vector<8x1xf32>
      %23 = arith.mulf %21, %22 : vector<8x1xf32>
      %cst_16 = arith.constant 0.000000e+00 : f32
      %24 = vector.broadcast %cst_16 : f32 to vector<8x1xf32>
      %25 = arith.maximumf %23, %24 : vector<8x1xf32>
      %26 = math.sqrt %25 : vector<8x1xf32>
      %cst_17 = arith.constant 9.99999997E-7 : f32
      %27 = vector.broadcast %cst_17 : f32 to vector<8x1xf32>
      %28 = arith.addf %26, %27 : vector<8x1xf32>
      %29 = tpu.reciprocal %28 : vector<8x1xf32> -> vector<8x1xf32>
      %c0_18 = arith.constant 0 : index
      %c0_19 = arith.constant 0 : index
      %30 = vector.load %arg4[%c0_18, %c0_19] : memref<1x256xf32, #tpu.memory_space<vmem>>, vector<1x256xf32>
      %c0_20 = arith.constant 0 : index
      %c0_21 = arith.constant 0 : index
      %31 = vector.load %arg5[%c0_20, %c0_21] : memref<1x256xf32, #tpu.memory_space<vmem>>, vector<1x256xf32>
      %32 = vector.broadcast %19 : vector<8x1xf32> to vector<8x256xf32>
      %33 = arith.subf %12, %32 : vector<8x256xf32>
      %34 = vector.broadcast %30 : vector<1x256xf32> to vector<8x256xf32>
      %35 = arith.mulf %34, %33 : vector<8x256xf32>
      %36 = vector.broadcast %29 : vector<8x1xf32> to vector<8x256xf32>
      %37 = arith.mulf %35, %36 : vector<8x256xf32>
      %38 = vector.broadcast %31 : vector<1x256xf32> to vector<8x256xf32>
      %39 = arith.addf %37, %38 : vector<8x256xf32>
      %40 = arith.truncf %39 : vector<8x256xf32> to vector<8x256xbf16>
      %c0_22 = arith.constant 0 : index
      %c0_23 = arith.constant 0 : index
      %41 = vector.load %arg9[%c0_22, %c0_23] : memref<8x256xbf16, #tpu.memory_space<vmem>>, vector<8x256xbf16>
      tpu.vector_store %arg9[%c0_22, %c0_23], %40 {strides = array<i32>} : memref<8x256xbf16, #tpu.memory_space<vmem>>, vector<8x256xbf16>,
    } else {
    }
    %c0 = arith.constant 0 : index
    %c0_1 = arith.constant 0 : index
    %3 = vector.load %arg9[%c0, %c0_1] : memref<8x256xbf16, #tpu.memory_space<vmem>>, vector<8x256xbf16>
    %c0_2 = arith.constant 0 : index
    %c0_3 = arith.constant 0 : index
    %4 = vector.load %arg6[%c0_2, %c0_3] : memref<256x128xbf16, #tpu.memory_space<vmem>>, vector<256x128xbf16>
    %cst = arith.constant dense<0.000000e+00> : vector<8x128xf32>
    %5 = tpu.matmul %3, %4, %cst {dimension_numbers = #tpu.dot_dimension_numbers<[1], [0], [0], [1], [0, 0, 1, 1], [], []>} : vector<8x256xbf16>, vector<256x128xbf16>, vector<8x128xf32> -> vector<8x128xf32>
    %c0_4 = arith.constant 0 : index
    %c0_5 = arith.constant 0 : index
    %6 = vector.load %arg3[%c0_4, %c0_5] : memref<8x128xf32, #tpu.memory_space<vmem>>, vector<8x128xf32>
    %7 = arith.addf %6, %5 : vector<8x128xf32>
    %c0_6 = arith.constant 0 : index
    %c0_7 = arith.constant 0 : index
    %8 = vector.load %arg7[%c0_6, %c0_7] : memref<1x128xf32, #tpu.memory_space<vmem>>, vector<1x128xf32>
    %9 = vector.broadcast %8 : vector<1x128xf32> to vector<8x128xf32>
    %10 = arith.addf %7, %9 : vector<8x128xf32>
    %c0_8 = arith.constant 0 : index
    %c0_9 = arith.constant 0 : index
    %11 = vector.load %arg8[%c0_8, %c0_9] : memref<8x128xf32, #tpu.memory_space<vmem>>, vector<8x128xf32>
    tpu.vector_store %arg8[%c0_8, %c0_9], %10 {strides = array<i32>} : memref<8x128xf32, #tpu.memory_space<vmem>>, vector<8x128xf32>,
    return
  }
  func.func @transform_0(%arg0: i32, %arg1: i32) -> (i32, i32) {
    %c0_i32 = arith.constant 0 : i32
    %c0_i32_0 = arith.constant 0 : i32
    return %arg0, %c0_i32 : i32, i32
  }
  func.func @transform_1(%arg0: i32, %arg1: i32) -> (i32, i32) {
    %c0_i32 = arith.constant 0 : i32
    return %arg0, %arg1 : i32, i32
  }
  func.func @transform_2(%arg0: i32, %arg1: i32) -> (i32, i32) {
    %c0_i32 = arith.constant 0 : i32
    %c0_i32_0 = arith.constant 0 : i32
    %c0_i32_1 = arith.constant 0 : i32
    return %c0_i32, %c0_i32_0 : i32, i32
  }
  func.func @transform_3(%arg0: i32, %arg1: i32) -> (i32, i32) {
    %c0_i32 = arith.constant 0 : i32
    %c0_i32_0 = arith.constant 0 : i32
    %c0_i32_1 = arith.constant 0 : i32
    return %c0_i32, %c0_i32_0 : i32, i32
  }
  func.func @transform_4(%arg0: i32, %arg1: i32) -> (i32, i32) {
    %c0_i32 = arith.constant 0 : i32
    %c0_i32_0 = arith.constant 0 : i32
    return %c0_i32, %arg1 : i32, i32
  }
  func.func @transform_5(%arg0: i32, %arg1: i32) -> (i32, i32) {
    %c0_i32 = arith.constant 0 : i32
    %c0_i32_0 = arith.constant 0 : i32
    return %c0_i32, %arg1 : i32, i32
  }
  func.func @transform_6(%arg0: i32, %arg1: i32) -> (i32, i32) {
    %c0_i32 = arith.constant 0 : i32
    return %arg0, %arg1 : i32, i32
  }
}

</mosaic_0001>

<llo_original>
// kernel: tpu_custom_call.1
$region0: #{tpu_custom_call.1}
  #allocation0 [shape = 'u32[]', space=smem, size = 0x4, offset = 0x4, fixed_abs, tag = 'smem constant byte address 0x4 - core index']
  #allocation1 [shape = 'u32[144,128]{1,0:T(1,128)}', space=vmem, size = 0x12000, scoped, tag = 'internal scratch']
  #allocation2 [shape = 'bf16[8,256]{1,0:T(8,128)(2,1)}', space=vmem, size = 0x1000, scoped, tag = 'scratch operand']
  %s0 = inlined_call_operand.hbm [shape: f32[16,256], index: 0, kind: input, shape index: {}]
  %s1 = inlined_call_operand.hbm [shape: f32[16,256], index: 1, kind: input, shape index: {}]
  %s2 = inlined_call_operand.vmem [shape: f32[1,256], index: 2, kind: input, shape index: {}]
  %s3 = inlined_call_operand.vmem [shape: f32[1,256], index: 3, kind: input, shape index: {}]
  %s4 = inlined_call_operand.hbm [shape: bf16[256,256], index: 4, kind: input, shape index: {}]
  %s5 = inlined_call_operand.vmem [shape: f32[1,256], index: 5, kind: input, shape index: {}]
  %s6 = inlined_call_operand.hbm [shape: f32[16,256], index: 6, kind: output, shape index: {}]
  %s7 = sld [smem:[#allocation0]]
  $region73: #{tpu_custom_call.1} parent=0
    _
  %s9 = ssub.s32 1, %s7
  %s10 = scalar_select 0, %s9, %s7
  $region1: #{tpu_custom_call.1} parent=0
    #allocation3 [shape = 'u8[16384]{0}', space=vmem, size = 0x4000, scoped, tag = 'input window, operand 0']
    #allocation4 [shape = 's32[2]{0}', space=sflag, size = 0x8, scoped, tag = 'scoped memory for tpu_custom_call.1']
    #allocation5 [shape = 's32[2]{0}', space=sflag, size = 0x8, scoped, tag = 'scoped memory for tpu_custom_call.1']
    #allocation6 [shape = 'u8[8192]{0}', space=vmem, size = 0x2000, scoped, tag = 'input window, operand 1']
    #allocation7 [shape = 's32[2]{0}', space=sflag, size = 0x8, scoped, tag = 'scoped memory for tpu_custom_call.1']
    #allocation8 [shape = 'u8[131072]{0}', space=vmem, size = 0x20000, scoped, tag = 'input window, operand 4']
    #allocation9 [shape = 'u8[8192]{0}', space=vmem, size = 0x2000, scoped, tag = 'output window, operand 0']
    %11 = vsyncpa [#allocation4], 0
    %s12 = scalar_lea.sflag [#allocation4], 1
    %13 = vsyncpa %s12, 0
    %14 = vsyncpa [#allocation7], 0
    %s15 = scalar_lea.sflag [#allocation7], 1
    %16 = vsyncpa %s15, 0
    %17 = vsyncpa [#allocation5], 0
    %s18 = scalar_lea.sflag [#allocation5], 1
    %19 = vsyncpa %s18, 0
    loop: start=0, step=1, limit=6
    $region2: #{tpu_custom_call.1} parent=1 // loop_pre_header
      _
    $region3: #{tpu_custom_call.1} parent=1 // loop_header
      %s21 = sphi 0, %s25
      %p22 = scmp.ge.s32.totalorder %s21, 6
      %s28 = sphi 0, %s40
      %s29 = sphi 0, %s36
      %s30 = sphi 0, %s28
      %s31 = sphi 0, %s29
      %s32 = sphi 0, %s30
      %s33 = sphi 0, %s31
      %s43 = sphi 0, %s45
      %s46 = sphi 0, %s43
      %s47 = sphi 0, %s46
      %s63 = sphi 0, %s47
      %s71 = sphi 0, %s73
      %s74 = sphi 0, %s71
      %s75 = sphi 0, %s74
      %s91 = sphi 0, %s75
      %s95 = sphi 0, %s95
      %s97 = sphi 0, %s95
      %s98 = sphi 0, %s97
      %s112 = sphi 0, %s98
      %s116 = sphi 0, %s116
      %s118 = sphi 0, %s116
      %s119 = sphi 0, %s118
      %s133 = sphi 0, %s119
      %s139 = sphi 0, %s141
      %s142 = sphi 0, %s139
      %s143 = sphi 0, %s142
      %s159 = sphi 0, %s143
      %s165 = sphi 0, %s167
      %s168 = sphi 0, %s165
      %s169 = sphi 0, %s168
      %s185 = sphi 0, %s169
      %s193 = sphi 0, %s195
      %s196 = sphi 0, %s193
      %s197 = sphi 0, %s196
      %s213 = sphi 0, %s197
    $region4: #{tpu_custom_call.1} parent=1 // loop_header_branch
      %24 = sbr.rel (%p22) target = $region8
    $region5: #{tpu_custom_call.1} parent=1 // loop_body
      %s26 = ssub.s32 %s21, 1
      %s27 = ssub.s32 %s21, 2
      %s34 = sadd.s32 1, %s29
      %p35 = scmp.ge.s32.totalorder %s34, 2
      %s36 = scalar_select %p35, 0, %s34
      %s37 = sadd.s32 1, %s28
      %s38 = scalar_select %p35, %s37, %s28
      %p39 = scmp.ge.s32.totalorder %s38, 2
      %s40 = scalar_select %p39, 0, %s38
      %s41 = ssub.s32 %s28, %s40
      %p42 = scmp.eq.s32.totalorder %s41, 0
      %s44 = sadd.s32 %s43, 1
      %s45 = scalar_select %p42, %s43, %s44
      %p48 = pneg %p42
      %p49 = scmp.eq.s32.totalorder %s21, 3
      %p50 = por %p48, %p49
      %p51 = scmp.ne.s32.totalorder %s43, %s46
      %p52 = scmp.eq.s32.totalorder %s21, 0
      %p53 = por %p51, %p52
      %p54 = scmp.ne.s32.totalorder %s43, %s46
      %p55 = scmp.eq.s32.totalorder %s26, 3
      %p56 = por %p54, %p55
      %p57 = scmp.ne.s32.totalorder %s46, %s47
      %p58 = scmp.eq.s32.totalorder %s26, 0
      %p59 = por %p57, %p58
      %p60 = scmp.ne.s32.totalorder %s46, %s47
      %p61 = scmp.eq.s32.totalorder %s27, 3
      %p62 = por %p60, %p61
      %p64 = scmp.ne.s32.totalorder %s47, %s63
      %p65 = scmp.eq.s32.totalorder %s27, 0
      %p66 = por %p64, %p65
      %s67 = ssub.s32 %s28, %s40
      %s68 = ssub.s32 %s29, %s36
      %s69 = sor.u32 %s67, %s68
      %p70 = scmp.eq.s32.totalorder %s69, 0
      %s72 = sadd.s32 %s71, 1
      %s73 = scalar_select %p70, %s71, %s72
      %p76 = pneg %p70
      %p77 = scmp.eq.s32.totalorder %s21, 3
      %p78 = por %p76, %p77
      %p79 = scmp.ne.s32.totalorder %s71, %s74
      %p80 = scmp.eq.s32.totalorder %s21, 0
      %p81 = por %p79, %p80
      %p82 = scmp.ne.s32.totalorder %s71, %s74
      %p83 = scmp.eq.s32.totalorder %s26, 3
      %p84 = por %p82, %p83
      %p85 = scmp.ne.s32.totalorder %s74, %s75
      %p86 = scmp.eq.s32.totalorder %s26, 0
      %p87 = por %p85, %p86
      %p88 = scmp.ne.s32.totalorder %s74, %s75
      %p89 = scmp.eq.s32.totalorder %s27, 3
      %p90 = por %p88, %p89
      %p92 = scmp.ne.s32.totalorder %s75, %s91
      %p93 = scmp.eq.s32.totalorder %s27, 0
      %p94 = por %p92, %p93
      %s96 = sadd.s32 %s95, 1
      %p99 = scmp.eq.s32.totalorder %s21, 3
      %p100 = scmp.ne.s32.totalorder %s95, %s97
      %p101 = scmp.eq.s32.totalorder %s21, 0
      %p102 = por %p100, %p101
      %p103 = scmp.ne.s32.totalorder %s95, %s97
      %p104 = scmp.eq.s32.totalorder %s26, 3
      %p105 = por %p103, %p104
      %p106 = scmp.ne.s32.totalorder %s97, %s98
      %p107 = scmp.eq.s32.totalorder %s26, 0
      %p108 = por %p106, %p107
      %p109 = scmp.ne.s32.totalorder %s97, %s98
      %p110 = scmp.eq.s32.totalorder %s27, 3
      %p111 = por %p109, %p110
      %p113 = scmp.ne.s32.totalorder %s98, %s112
      %p114 = scmp.eq.s32.totalorder %s27, 0
      %p115 = por %p113, %p114
      %s117 = sadd.s32 %s116, 1
      %p120 = scmp.eq.s32.totalorder %s21, 3
      %p121 = scmp.ne.s32.totalorder %s116, %s118
      %p122 = scmp.eq.s32.totalorder %s21, 0
      %p123 = por %p121, %p122
      %p124 = scmp.ne.s32.totalorder %s116, %s118
      %p125 = scmp.eq.s32.totalorder %s26, 3
      %p126 = por %p124, %p125
      %p127 = scmp.ne.s32.totalorder %s118, %s119
      %p128 = scmp.eq.s32.totalorder %s26, 0
      %p129 = por %p127, %p128
      %p130 = scmp.ne.s32.totalorder %s118, %s119
      %p131 = scmp.eq.s32.totalorder %s27, 3
      %p132 = por %p130, %p131
      %p134 = scmp.ne.s32.totalorder %s119, %s133
      %p135 = scmp.eq.s32.totalorder %s27, 0
      %p136 = por %p134, %p135
      %s137 = ssub.s32 %s29, %s36
      %p138 = scmp.eq.s32.totalorder %s137, 0
      %s140 = sadd.s32 %s139, 1
      %s141 = scalar_select %p138, %s139, %s140
      %p144 = pneg %p138
      %p145 = scmp.eq.s32.totalorder %s21, 3
      %p146 = por %p144, %p145
      %p147 = scmp.ne.s32.totalorder %s139, %s142
      %p148 = scmp.eq.s32.totalorder %s21, 0
      %p149 = por %p147, %p148
      %p150 = scmp.ne.s32.totalorder %s139, %s142
      %p151 = scmp.eq.s32.totalorder %s26, 3
      %p152 = por %p150, %p151
      %p153 = scmp.ne.s32.totalorder %s142, %s143
      %p154 = scmp.eq.s32.totalorder %s26, 0
      %p155 = por %p153, %p154
      %p156 = scmp.ne.s32.totalorder %s142, %s143
      %p157 = scmp.eq.s32.totalorder %s27, 3
      %p158 = por %p156, %p157
      %p160 = scmp.ne.s32.totalorder %s143, %s159
      %p161 = scmp.eq.s32.totalorder %s27, 0
      %p162 = por %p160, %p161
      %s163 = ssub.s32 %s29, %s36
      %p164 = scmp.eq.s32.totalorder %s163, 0
      %s166 = sadd.s32 %s165, 1
      %s167 = scalar_select %p164, %s165, %s166
      %p170 = pneg %p164
      %p171 = scmp.eq.s32.totalorder %s21, 3
      %p172 = por %p170, %p171
      %p173 = scmp.ne.s32.totalorder %s165, %s168
      %p174 = scmp.eq.s32.totalorder %s21, 0
      %p175 = por %p173, %p174
      %p176 = scmp.ne.s32.totalorder %s165, %s168
      %p177 = scmp.eq.s32.totalorder %s26, 3
      %p178 = por %p176, %p177
      %p179 = scmp.ne.s32.totalorder %s168, %s169
      %p180 = scmp.eq.s32.totalorder %s26, 0
      %p181 = por %p179, %p180
      %p182 = scmp.ne.s32.totalorder %s168, %s169
      %p183 = scmp.eq.s32.totalorder %s27, 3
      %p184 = por %p182, %p183
      %p186 = scmp.ne.s32.totalorder %s169, %s185
      %p187 = scmp.eq.s32.totalorder %s27, 0
      %p188 = por %p186, %p187
      %s189 = ssub.s32 %s28, %s40
      %s190 = ssub.s32 %s29, %s36
      %s191 = sor.u32 %s189, %s190
      %p192 = scmp.eq.s32.totalorder %s191, 0
      %s194 = sadd.s32 %s193, 1
      %s195 = scalar_select %p192, %s193, %s194
      %p198 = pneg %p192
      %p199 = scmp.eq.s32.totalorder %s21, 3
      %p200 = por %p198, %p199
      %p201 = scmp.ne.s32.totalorder %s193, %s196
      %p202 = scmp.eq.s32.totalorder %s21, 0
      %p203 = por %p201, %p202
      %p204 = scmp.ne.s32.totalorder %s193, %s196
      %p205 = scmp.eq.s32.totalorder %s26, 3
      %p206 = por %p204, %p205
      %p207 = scmp.ne.s32.totalorder %s196, %s197
      %p208 = scmp.eq.s32.totalorder %s26, 0
      %p209 = por %p207, %p208
      %p210 = scmp.ne.s32.totalorder %s196, %s197
      %p211 = scmp.eq.s32.totalorder %s27, 3
      %p212 = por %p210, %p211
      %p214 = scmp.ne.s32.totalorder %s197, %s213
      %p215 = scmp.eq.s32.totalorder %s27, 0
      %p216 = por %p214, %p215
      %p217 = scmp.le.s32.totalorder 1, %s21
      %p218 = scmp.lt.s32.totalorder %s21, 5
      %p219 = pnand %p217, %p218
      %p220 = pneg %p219
      // Predicated region
      $region9: #{tpu_custom_call.1} parent=5 // pred_check
        _
      $region10: #{tpu_custom_call.1} parent=5 // pred_check_branch
        %222 = sbr.rel (%p219) target = $region12
      $region11: #{tpu_custom_call.1} parent=5 // pred_region
        %s223 = ssub.s32 %s21, 1
        // Predicated region
        $region13: #{tpu_custom_call.1} parent=11 // pred_check
          %p224 = pneg %p108
        $region14: #{tpu_custom_call.1} parent=11 // pred_check_branch
          %226 = sbr.rel (%p224) target = $region16
        $region15: #{tpu_custom_call.1} parent=11 // pred_region
          _
        $region16: #{tpu_custom_call.1} parent=11 // pred_fallthru
          _
        // Predicated region
        $region17: #{tpu_custom_call.1} parent=11 // pred_check
          %p227 = pneg %p129
        $region18: #{tpu_custom_call.1} parent=11 // pred_check_branch
          %229 = sbr.rel (%p227) target = $region20
        $region19: #{tpu_custom_call.1} parent=11 // pred_region
          _
        $region20: #{tpu_custom_call.1} parent=11 // pred_fallthru
          _
      $region12: #{tpu_custom_call.1} parent=5 // pred_fallthru
        _
      %p230 = scmp.lt.s32.totalorder %s21, 4
      // Predicated region
      $region21: #{tpu_custom_call.1} parent=5 // pred_check
        %p231 = pneg %p230
      $region22: #{tpu_custom_call.1} parent=5 // pred_check_branch
        %233 = sbr.rel (%p231) target = $region24
      $region23: #{tpu_custom_call.1} parent=5 // pred_region
        // Predicated region
        $region25: #{tpu_custom_call.1} parent=23 // pred_check
          %p234 = pneg %p53
        $region26: #{tpu_custom_call.1} parent=23 // pred_check_branch
          %236 = sbr.rel (%p234) target = $region28
        $region27: #{tpu_custom_call.1} parent=23 // pred_region
          %s237 = sand.u32 %s43, 1
          %s238 = scalar_lea.sflag [#allocation4], %s237
          %s239 = sand.u32 %s43, 1
          %s240 = smul.addr %s239, 16
          %s241 = scalar_lea.vmem [#allocation3], %s240
          %s243 = ssub.s32 256, 256
          %244 = vsyncadd %s238, %s243
          %s245 = smul.addr %s28, 2
          %s246 = smul.addr %s245, 128
          %s247 = scalar_lea.hbm %s0, %s246
          %s249 = sshll.u32 %s241, 4
          %s250 = int_to_ptr.vmem [resolvable:$true] %s249
          %252 = dma.hbm_to_vmem [thread:$0]  %s247, 256, %s250, %s238
        $region28: #{tpu_custom_call.1} parent=23 // pred_fallthru
          _
        // Predicated region
        $region29: #{tpu_custom_call.1} parent=23 // pred_check
          %p253 = pneg %p81
        $region30: #{tpu_custom_call.1} parent=23 // pred_check_branch
          %255 = sbr.rel (%p253) target = $region32
        $region31: #{tpu_custom_call.1} parent=23 // pred_region
          %s256 = sand.u32 %s21, 1
          %s257 = scalar_lea.sflag [#allocation7], %s256
          %s258 = sand.u32 %s71, 1
          %s259 = smul.addr %s258, 8
          %s260 = scalar_lea.vmem [#allocation6], %s259
          %s262 = ssub.s32 128, 128
          %263 = vsyncadd %s257, %s262
          %s264 = smul.addr %s28, 2
          %s265 = sadd.s32 %s29, %s264
          %s266 = smul.addr %s265, 128
          %s267 = scalar_lea.hbm %s1, %s266
          %s269 = sshll.u32 %s260, 4
          %s270 = int_to_ptr.vmem [resolvable:$true] %s269
          %272 = dma.hbm_to_vmem [thread:$0]  %s267, 128, %s270, %s257
        $region32: #{tpu_custom_call.1} parent=23 // pred_fallthru
          _
        // Predicated region
        $region33: #{tpu_custom_call.1} parent=23 // pred_check
          %p273 = pneg %p149
        $region34: #{tpu_custom_call.1} parent=23 // pred_check_branch
          %275 = sbr.rel (%p273) target = $region36
        $region35: #{tpu_custom_call.1} parent=23 // pred_region
          %s276 = sand.u32 %s21, 1
          %s277 = scalar_lea.sflag [#allocation7], %s276
          %s278 = sand.u32 %s139, 1
          %s279 = smul.addr %s278, 128
          %s280 = scalar_lea.vmem [#allocation8], %s279
          %s282 = ssub.s32 2048, 2048
          %283 = vsyncadd %s277, %s282
          %s284 = smul.addr %s29, 64
          %s285 = scalar_lea.hbm %s4, %s284
          %s286 = sshll.u32 %s280, 4
          %s287 = int_to_ptr.vmem [resolvable:$true] %s286
          %292 = dma.hbm_to_vmem [thread:$0]  %s285, 2048, %s287, %s277, 128, 64, 4
        $region36: #{tpu_custom_call.1} parent=23 // pred_fallthru
          _
        // Predicated region
        $region37: #{tpu_custom_call.1} parent=23 // pred_check
          %p293 = pneg %p175
        $region38: #{tpu_custom_call.1} parent=23 // pred_check_branch
          %295 = sbr.rel (%p293) target = $region40
        $region39: #{tpu_custom_call.1} parent=23 // pred_region
          %p296 = scmp.lt.s32.totalorder %s29, 1
          %s297 = scalar_select %p296, %s29, 1
          %s298 = scalar_lea.vmem %s5, %s297
        $region40: #{tpu_custom_call.1} parent=23 // pred_fallthru
          _
      $region24: #{tpu_custom_call.1} parent=5 // pred_fallthru
        _
      %p299 = scmp.le.s32.totalorder 1, %s21
      %p300 = scmp.lt.s32.totalorder %s21, 5
      %p301 = pnand %p299, %p300
      %p302 = pneg %p301
      // Predicated region
      $region41: #{tpu_custom_call.1} parent=5 // pred_check
        _
      $region42: #{tpu_custom_call.1} parent=5 // pred_check_branch
        %304 = sbr.rel (%p301) target = $region44
      $region43: #{tpu_custom_call.1} parent=5 // pred_region
        %s305 = ssub.s32 %s21, 1
        %s306 = sand.u32 %s46, 1
        %s307 = scalar_lea.sflag [#allocation4], %s306
        %s308 = sand.u32 %s46, 1
        %s309 = smul.addr %s308, 16
        %s310 = scalar_lea.vmem [#allocation3], %s309
        // Predicated region
        $region45: #{tpu_custom_call.1} parent=43 // pred_check
          %p311 = pneg %p59
        $region46: #{tpu_custom_call.1} parent=43 // pred_check_branch
          %313 = sbr.rel (%p311) target = $region48
        $region47: #{tpu_custom_call.1} parent=43 // pred_region
          %314 = dma.done %s307, 256
        $region48: #{tpu_custom_call.1} parent=43 // pred_fallthru
          _
        %s315 = sand.u32 %s26, 1
        %s316 = scalar_lea.sflag [#allocation7], %s315
        %s317 = sand.u32 %s74, 1
        %s318 = smul.addr %s317, 8
        %s319 = scalar_lea.vmem [#allocation6], %s318
        // Predicated region
        $region49: #{tpu_custom_call.1} parent=43 // pred_check
          %p320 = pneg %p87
        $region50: #{tpu_custom_call.1} parent=43 // pred_check_branch
          %322 = sbr.rel (%p320) target = $region52
        $region51: #{tpu_custom_call.1} parent=43 // pred_region
          %323 = dma.done %s316, 128
        $region52: #{tpu_custom_call.1} parent=43 // pred_fallthru
          _
        %s324 = sand.u32 %s26, 1
        %s325 = scalar_lea.sflag [#allocation7], %s324
        %s326 = sand.u32 %s142, 1
        %s327 = smul.addr %s326, 128
        %s328 = scalar_lea.vmem [#allocation8], %s327
        // Predicated region
        $region53: #{tpu_custom_call.1} parent=43 // pred_check
          %p329 = pneg %p155
        $region54: #{tpu_custom_call.1} parent=43 // pred_check_branch
          %331 = sbr.rel (%p329) target = $region56
        $region55: #{tpu_custom_call.1} parent=43 // pred_region
          %332 = dma.done %s325, 2048
        $region56: #{tpu_custom_call.1} parent=43 // pred_fallthru
          _
        %s333 = sand.u32 %s46, 1
        %s334 = scalar_lea.sflag [#allocation4], %s333
        %s335 = sand.u32 %s46, 1
        %s336 = smul.addr %s335, 16
        %s337 = scalar_lea.vmem [#allocation3], %s336
        %p338 = pneg %p59
        %p339 = pneg %p56
        %s340 = sand.u32 %s26, 1
        %s341 = scalar_lea.sflag [#allocation7], %s340
        %s342 = sand.u32 %s74, 1
        %s343 = smul.addr %s342, 8
        %s344 = scalar_lea.vmem [#allocation6], %s343
        %p345 = pneg %p87
        %p346 = pneg %p84
        %p347 = pneg %p108
        %p348 = pneg %p105
        %p349 = pneg %p129
        %p350 = pneg %p126
        %s351 = sand.u32 %s26, 1
        %s352 = scalar_lea.sflag [#allocation7], %s351
        %s353 = sand.u32 %s142, 1
        %s354 = smul.addr %s353, 128
        %s355 = scalar_lea.vmem [#allocation8], %s354
        %p356 = pneg %p155
        %p357 = pneg %p152
        %p358 = scmp.lt.s32.totalorder %s31, 1
        %s359 = scalar_select %p358, %s31, 1
        %s360 = scalar_lea.vmem %s5, %s359
        %p361 = pneg %p181
        %p362 = pneg %p178
        %p363 = pneg %p209
        %p364 = pneg %p206
        %s365 = sand.u32 %s196, 1
        %s366 = scalar_lea.sflag [#allocation5], %s365
        %s367 = sand.u32 %s196, 1
        %s368 = smul.addr %s367, 8
        %s369 = scalar_lea.vmem [#allocation9], %s368
        %p370 = scmp.lt.s32.totalorder %s31, 1
        %s371 = scalar_select %p370, %s31, 1
        %s372 = scalar_lea.vmem %s5, %s371
        %p374 = scmp.eq.s32.totalorder %s31, 0
        // Predicated region
        $region57: #{tpu_custom_call.1} parent=43 // pred_check
          %p375 = pneg %p374
        $region58: #{tpu_custom_call.1} parent=43 // pred_check_branch
          %377 = sbr.rel (%p375) target = $region60
        $region59: #{tpu_custom_call.1} parent=43 // pred_region
          %v378 = vld [vmem:[%s310] sm:$0xff]
          %v379 = vld [vmem:[%s310 + $0x8] sm:$0xff]
          %v380 = vadd.f32 %v378, %v379
          %381 = vadd.xlane.f32.xlu0 %v380
          %v382 = vpop.xlane.xlu0 %381
          %v383 = vmul.f32 %v378, %v378
          %v384 = vmul.f32 %v379, %v379
          %v385 = vadd.f32 %v383, %v384
          %386 = vadd.xlane.f32.xlu0 %v385
          %v387 = vpop.xlane.xlu0 %386
          %v388 = vmul.f32 %v382, 0.00390625
          %v389 = vmul.f32 %v388, %v382
          %v390 = vsub.f32 %v387, %v389
          %v391 = vmul.f32 %v390, 0.003921569
          %v392 = vmax.f32 %v391, 0.0
          %v393 = vrsqrt.pop %v392
          %v394 = vmul.f32 %v392, %v393
          %vm395 = vcmp.eq.f32.partialorder %v392, inf
          %v396 = vsel %vm395, %v392, %v394
          %vm397 = vcmp.eq.f32.partialorder %v392, 0.0
          %v398 = vand.u32 %v392, 2147483648
          %v399 = vsel %vm397, %v398, %v396
          %v400 = vadd.f32 %v399, 1e-06
          %v401 = vrcp.pop %v400
          %v402 = vld [vmem:[%s2] sm:$0x3]
          %v403 = vld [vmem:[%s3] sm:$0x3]
          %v404 = vsub.f32 %v378, %v388
          %v405 = vsub.f32 %v379, %v388
          %v407 = vlaneseq
          %v408 = vshrl.u32 %v407, 7
          %v409 = vsub.s32 0, %v408
          %v410 = vrot.slane %v402, %v409
          %v411 = vlaneseq
          %v412 = vshrl.u32 %v411, 7
          %v413 = vsub.s32 1, %v412
          %v414 = vrot.slane %v402, %v413
          %v417 = vmul.f32 %v410, %v404
          %v418 = vmul.f32 %v414, %v405
          %v419 = vmul.f32 %v417, %v401
          %v420 = vmul.f32 %v418, %v401
          %v422 = vlaneseq
          %v423 = vshrl.u32 %v422, 7
          %v424 = vsub.s32 0, %v423
          %v425 = vrot.slane %v403, %v424
          %v426 = vlaneseq
          %v427 = vshrl.u32 %v426, 7
          %v428 = vsub.s32 1, %v427
          %v429 = vrot.slane %v403, %v428
          %v432 = vadd.f32 %v419, %v425
          %v433 = vadd.f32 %v420, %v429
          %v434 = vpack.c.bf16 %v432, %v432
          %v435 = vpack.c.bf16 %v433, %v433
          %v438 = vunpack.c.l.b16 %v434
          %v439 = vunpack.c.l.b16 %v435
          %v440 = vpack.c.b16 %v439, %v438
          %442 = vst [vmem:[#allocation2] sm:$0xff] %v440
        $region60: #{tpu_custom_call.1} parent=43 // pred_fallthru
          _
        %v443 = vld [vmem:[#allocation2] sm:$0xff]
        %v444 = vld [vmem:[%s328] sm:$0xf]
        %v445 = vld [vmem:[%s328 + $0x4] sm:$0xf]
        %v446 = vld [vmem:[%s328 + $0x8] sm:$0xf]
        %v447 = vld [vmem:[%s328 + $0xc] sm:$0xf]
        %v448 = vld [vmem:[%s328 + $0x10] sm:$0xf]
        %v449 = vld [vmem:[%s328 + $0x14] sm:$0xf]
        %v450 = vld [vmem:[%s328 + $0x18] sm:$0xf]
        %v451 = vld [vmem:[%s328 + $0x1c] sm:$0xf]
        %v452 = vld [vmem:[%s328 + $0x20] sm:$0xf]
        %v453 = vld [vmem:[%s328 + $0x24] sm:$0xf]
        %v454 = vld [vmem:[%s328 + $0x28] sm:$0xf]
        %v455 = vld [vmem:[%s328 + $0x2c] sm:$0xf]
        %v456 = vld [vmem:[%s328 + $0x30] sm:$0xf]
        %v457 = vld [vmem:[%s328 + $0x34] sm:$0xf]
        %v458 = vld [vmem:[%s328 + $0x38] sm:$0xf]
        %v459 = vld [vmem:[%s328 + $0x3c] sm:$0xf]
        %v460 = vld [vmem:[%s328 + $0x40] sm:$0xf]
        %v461 = vld [vmem:[%s328 + $0x44] sm:$0xf]
        %v462 = vld [vmem:[%s328 + $0x48] sm:$0xf]
        %v463 = vld [vmem:[%s328 + $0x4c] sm:$0xf]
        %v464 = vld [vmem:[%s328 + $0x50] sm:$0xf]
        %v465 = vld [vmem:[%s328 + $0x54] sm:$0xf]
        %v466 = vld [vmem:[%s328 + $0x58] sm:$0xf]
        %v467 = vld [vmem:[%s328 + $0x5c] sm:$0xf]
        %v468 = vld [vmem:[%s328 + $0x60] sm:$0xf]
        %v469 = vld [vmem:[%s328 + $0x64] sm:$0xf]
        %v470 = vld [vmem:[%s328 + $0x68] sm:$0xf]
        %v471 = vld [vmem:[%s328 + $0x6c] sm:$0xf]
        %v472 = vld [vmem:[%s328 + $0x70] sm:$0xf]
        %v473 = vld [vmem:[%s328 + $0x74] sm:$0xf]
        %v474 = vld [vmem:[%s328 + $0x78] sm:$0xf]
        %v475 = vld [vmem:[%s328 + $0x7c] sm:$0xf]
        %v477 = vunpack.c.l.b16 %v443
        %v478 = vunpack.c.h.b16 %v443
        %v479 = vpack.c.b16 %v477, %v477
        %v480 = vpack.c.b16 %v478, %v478
        %v515 = vunpack.c.l.b16 %v444
        %v516 = vunpack.c.l.b16 %v445
        %v517 = vunpack.c.l.b16 %v446
        %v518 = vunpack.c.l.b16 %v447
        %v519 = vunpack.c.l.b16 %v448
        %v520 = vunpack.c.l.b16 %v449
        %v521 = vunpack.c.l.b16 %v450
        %v522 = vunpack.c.l.b16 %v451
        %v523 = vunpack.c.l.b16 %v452
        %v524 = vunpack.c.l.b16 %v453
        %v525 = vunpack.c.l.b16 %v454
        %v526 = vunpack.c.l.b16 %v455
        %v527 = vunpack.c.l.b16 %v456
        %v528 = vunpack.c.l.b16 %v457
        %v529 = vunpack.c.l.b16 %v458
        %v530 = vunpack.c.l.b16 %v459
        %v531 = vunpack.c.l.b16 %v460
        %v532 = vunpack.c.l.b16 %v461
        %v533 = vunpack.c.l.b16 %v462
        %v534 = vunpack.c.l.b16 %v463
        %v535 = vunpack.c.l.b16 %v464
        %v536 = vunpack.c.l.b16 %v465
        %v537 = vunpack.c.l.b16 %v466
        %v538 = vunpack.c.l.b16 %v467
        %v539 = vunpack.c.l.b16 %v468
        %v540 = vunpack.c.l.b16 %v469
        %v541 = vunpack.c.l.b16 %v470
        %v542 = vunpack.c.l.b16 %v471
        %v543 = vunpack.c.l.b16 %v472
        %v544 = vunpack.c.l.b16 %v473
        %v545 = vunpack.c.l.b16 %v474
        %v546 = vunpack.c.l.b16 %v475
        %v547 = vpack.c.b16 %v516, %v515
        %v548 = vpack.c.b16 %v518, %v517
        %v549 = vpack.c.b16 %v520, %v519
        %v550 = vpack.c.b16 %v522, %v521
        %v551 = vpack.c.b16 %v524, %v523
        %v552 = vpack.c.b16 %v526, %v525
        %v553 = vpack.c.b16 %v528, %v527
        %v554 = vpack.c.b16 %v530, %v529
        %v555 = vpack.c.b16 %v532, %v531
        %v556 = vpack.c.b16 %v534, %v533
        %v557 = vpack.c.b16 %v536, %v535
        %v558 = vpack.c.b16 %v538, %v537
        %v559 = vpack.c.b16 %v540, %v539
        %v560 = vpack.c.b16 %v542, %v541
        %v561 = vpack.c.b16 %v544, %v543
        %v562 = vpack.c.b16 %v546, %v545
        %579 = vmatprep.subr.bf16.mxu0 0
        %580 = vmatpush1.bf16.msra.mxu0 %v547
        %581 = vmatprep.subr.bf16.mxu0 0
        %582 = vmatpush1.bf16.msra.mxu0 %v548
        %583 = vmatprep.subr.bf16.mxu0 0
        %584 = vmatpush1.bf16.msra.mxu0 %v549
        %585 = vmatprep.subr.bf16.mxu0 0
        %586 = vmatpush1.bf16.msra.mxu0 %v550
        %587 = vmatprep.subr.bf16.mxu0 0
        %588 = vmatpush1.bf16.msra.mxu0 %v551
        %589 = vmatprep.subr.bf16.mxu0 0
        %590 = vmatpush1.bf16.msra.mxu0 %v552
        %591 = vmatprep.subr.bf16.mxu0 0
        %592 = vmatpush1.bf16.msra.mxu0 %v553
        %593 = vmatprep.subr.bf16.mxu0 0
        %594 = vmatpush1.bf16.msra.mxu0 %v554
        %595 = vmatprep.subr.bf16.mxu0 0
        %596 = vmatpush1.bf16.msra.mxu0 %v555
        %597 = vmatprep.subr.bf16.mxu0 0
        %598 = vmatpush1.bf16.msra.mxu0 %v556
        %599 = vmatprep.subr.bf16.mxu0 0
        %600 = vmatpush1.bf16.msra.mxu0 %v557
        %601 = vmatprep.subr.bf16.mxu0 0
        %602 = vmatpush1.bf16.msra.mxu0 %v558
        %603 = vmatprep.subr.bf16.mxu0 0
        %604 = vmatpush1.bf16.msra.mxu0 %v559
        %605 = vmatprep.subr.bf16.mxu0 0
        %606 = vmatpush1.bf16.msra.mxu0 %v560
        %607 = vmatprep.subr.bf16.mxu0 0
        %608 = vmatpush1.bf16.msra.mxu0 %v561
        %609 = vmatprep.subr.bf16.mxu0 0
        %610 = vmatpush1.bf16.msra.mxu0 %v562
        %611 = vmatprep.mubr.bf16.mxu0 %v480
        %612 = vmatmul.mubr.bf16.gmra.mrb[0].mxu0 %v479
        %v613 = vpop.f32.mrb[0].mxu0
        %v614 = vadd.f32 0.0, %v613
        %v615 = vpop.f32.mrb[0].mxu0
        %v616 = vpop.f32.mrb[0].mxu0
        %v617 = vpop.f32.mrb[0].mxu0
        %618 = vdwg.mxu0
        %v619 = vld [vmem:[%s319] sm:$0xff]
        %v620 = vadd.f32 %v619, %v614
        %v621 = vld [vmem:[%s372] sm:$0x1]
        %v623 = vlaneseq
        %v624 = vshrl.u32 %v623, 7
        %v625 = vsub.s32 0, %v624
        %v626 = vrot.slane %v621, %v625
        %v628 = vadd.f32 %v620, %v626
        %629 = vst [vmem:[%s369] sm:$0xff] %v628
        %s630 = sand.u32 %s196, 1
        %s631 = scalar_lea.sflag [#allocation5], %s630
        %s632 = sand.u32 %s196, 1
        %s633 = smul.addr %s632, 8
        %s634 = scalar_lea.vmem [#allocation9], %s633
        // Predicated region
        $region61: #{tpu_custom_call.1} parent=43 // pred_check
          %p635 = pneg %p206
        $region62: #{tpu_custom_call.1} parent=43 // pred_check_branch
          %637 = sbr.rel (%p635) target = $region64
        $region63: #{tpu_custom_call.1} parent=43 // pred_region
          %s639 = ssub.s32 128, 128
          %640 = vsyncadd %s631, %s639
          %s641 = smul.addr %s30, 2
          %s642 = sadd.s32 %s31, %s641
          %s643 = smul.addr %s642, 128
          %s644 = scalar_lea.hbm %s6, %s643
          %s646 = sshll.u32 %s634, 4
          %s647 = int_to_ptr.vmem [resolvable:$true] %s646
          %649 = dma.vmem_to_hbm [thread:$0]  %s647, 128, %s644, %s631
        $region64: #{tpu_custom_call.1} parent=43 // pred_fallthru
          _
      $region44: #{tpu_custom_call.1} parent=5 // pred_fallthru
        _
      %p650 = scmp.le.s32.totalorder 2, %s21
      // Predicated region
      $region65: #{tpu_custom_call.1} parent=5 // pred_check
        %p651 = pneg %p650
      $region66: #{tpu_custom_call.1} parent=5 // pred_check_branch
        %653 = sbr.rel (%p651) target = $region68
      $region67: #{tpu_custom_call.1} parent=5 // pred_region
        %s654 = ssub.s32 %s21, 2
        // Predicated region
        $region69: #{tpu_custom_call.1} parent=67 // pred_check
          %p655 = pneg %p212
        $region70: #{tpu_custom_call.1} parent=67 // pred_check_branch
          %657 = sbr.rel (%p655) target = $region72
        $region71: #{tpu_custom_call.1} parent=67 // pred_region
          %s658 = sand.u32 %s197, 1
          %s659 = scalar_lea.sflag [#allocation5], %s658
          %s660 = sand.u32 %s197, 1
          %s661 = smul.addr %s660, 8
          %s662 = scalar_lea.vmem [#allocation9], %s661
          %663 = dma.done %s659, 128
        $region72: #{tpu_custom_call.1} parent=67 // pred_fallthru
          _
      $region68: #{tpu_custom_call.1} parent=5 // pred_fallthru
        _
    $region6: #{tpu_custom_call.1} parent=1 // loop_footer
      %s25 = sadd.s32 1, %s21
    $region7: #{tpu_custom_call.1} parent=1 // loop_footer_branch
      %20 = sbr.rel target = $region3
    $region8: #{tpu_custom_call.1} parent=1 // loop_exit
      _
    %664 = vsyncpa [#allocation4], 1
    %s665 = scalar_lea.sflag [#allocation4], 1
    %666 = vsyncpa %s665, 1
    %667 = vsyncpa [#allocation7], 1
    %s668 = scalar_lea.sflag [#allocation7], 1
    %669 = vsyncpa %s668, 1
    %670 = vsyncpa [#allocation5], 1
    %s671 = scalar_lea.sflag [#allocation5], 1
    %672 = vsyncpa %s671, 1

</llo_original>
